<compile_context>
chip_gen: v5e
topology: v5e:2x2
jax: 0.10.0
libtpu: 0.0.40
codegen_flags: <defaults>
</compile_context>

<pallas_src>
import jax
import jax.numpy as jnp
from jax import lax
from jax.experimental import pallas as pl
from jax.experimental.pallas import tpu as pltpu


# -----------------------------------------------------------------------------
# Small helpers: padding / tile selection / per-generation VMEM sizing.
# -----------------------------------------------------------------------------
def _round_up(x, m):
    return ((x + m - 1) // m) * m


def _pow2_tile(n, lo, hi):
    t = lo
    while t < hi and t < n:
        t *= 2
    return t


def _vmem_limit_bytes():
    # ~96 MiB scoped limit on v5e/v6e (128 MiB physical), ~48 MiB on v7x (64 MiB).
    try:
        cap = int(pltpu.get_tpu_info().vmem_capacity_bytes)
    except Exception:
        cap = 64 * 2 ** 20
    return int(min(cap * 3 // 4, 100 * 2 ** 20))


def _choose_lstm_tiles(B, L, H, stream_bytes, budget, time_chunk=None):
    Bb = _pow2_tile(B, 16, 128)          # target the MXU-friendly 128-row tile
    Lt = _pow2_tile(L, 8, 128)
    if time_chunk is not None:
        Lt = min(Lt, max(8, int(time_chunk)))

    def footprint(bb, lt):
        gate = 2 * 2 * lt * bb * 4 * H * stream_bytes   # fwd+bwd, double-buffered
        outs = 2 * 2 * lt * bb * H * stream_bytes
        wts = 2 * H * 4 * H * stream_bytes
        state = 4 * bb * H * 4
        return gate + outs + wts + state

    while footprint(Bb, Lt) > budget and Lt > 8:        # shrink the time chunk first
        Lt //= 2
    while footprint(Bb, Lt) > budget and Bb > 16:       # then the batch tile
        Bb //= 2
    return Bb, Lt


def _choose_attn_batch_tile(Bb, Lp, H, Ct, stream_bytes, budget):
    def footprint(bb):
        rnn = 2 * 2 * Lp * bb * H * stream_bytes
        attw = 2 * 2 * bb * Ct * H * stream_bytes
        scr = 2 * bb * Ct * Lp * 4 + 2 * bb * Ct * H * 4
        return rnn + attw + scr

    bb = Bb
    while footprint(bb) > budget and bb > 16:
        bb //= 2
    return bb


# -----------------------------------------------------------------------------
# Kernel 1: single-layer bidirectional LSTM recurrence, time-major, gridded
# over (batch tile, time chunk).  Input projections are precomputed in XLA;
# only h @ Wh runs inside the serial loop.  Packed-sequence semantics are
# emulated via length masking.  The backward chain reads/writes time-reversed
# blocks selected by its index_maps, so no tensor flip is needed anywhere.
# -----------------------------------------------------------------------------
def bilstm_kernel(len_ref, gf_ref, gb_ref, whf_ref, whb_ref,
                  outf_ref, outb_ref, hf_sc, cf_sc, hb_sc, cb_sc):
    Lt = gf_ref.shape[0]
    H = hf_sc.shape[1]
    t_chunk = pl.program_id(1)
    nt = pl.num_programs(1)

    @pl.when(t_chunk == 0)
    def _init():
        hf_sc[...] = jnp.zeros_like(hf_sc)
        cf_sc[...] = jnp.zeros_like(cf_sc)
        hb_sc[...] = jnp.zeros_like(hb_sc)
        cb_sc[...] = jnp.zeros_like(cb_sc)

    lengths = len_ref[...]                      # (Bb, 1) int32
    whf = whf_ref[...]                          # (H, 4H), resident across chunks
    whb = whb_ref[...]

    t0_f = t_chunk * Lt                         # true time of fwd local row 0
    t0_b = (nt - 1 - t_chunk) * Lt              # true time of bwd block row 0

    def cell(gates_in, h, c, wh):
        # Streamed gates may be bf16; matmul accumulates in f32, cell math is f32.
        gates = gates_in.astype(jnp.float32) + jnp.dot(
            h.astype(wh.dtype), wh, preferred_element_type=jnp.float32)
        i = jax.nn.sigmoid(gates[:, 0 * H:1 * H])
        f = jax.nn.sigmoid(gates[:, 1 * H:2 * H])
        g = jnp.tanh(gates[:, 2 * H:3 * H])
        o = jax.nn.sigmoid(gates[:, 3 * H:4 * H])
        c_new = f * c + i * g
        h_new = o * jnp.tanh(c_new)
        return h_new, c_new

    def body(tau, carry):
        h_f, c_f, h_b, c_b = carry

        # ---- forward chain: true time t0_f + tau, local row tau -------------
        hf_new, cf_new = cell(gf_ref[tau], h_f, c_f, whf)
        valid_f = (t0_f + tau) < lengths                      # (Bb, 1) bool
        h_f = jnp.where(valid_f, hf_new, h_f)
        c_f = jnp.where(valid_f, cf_new, c_f)
        outf_ref[tau] = jnp.where(valid_f, hf_new, 0.0).astype(outf_ref.dtype)

        # ---- backward chain (independent chain, interleaved) ----------------
        # true time t0_b + (Lt-1-tau), local row Lt-1-tau of the reversed block
        row = Lt - 1 - tau
        hb_new, cb_new = cell(gb_ref[row], h_b, c_b, whb)
        valid_b = (t0_b + row) < lengths
        h_b = jnp.where(valid_b, hb_new, h_b)
        c_b = jnp.where(valid_b, cb_new, c_b)
        outb_ref[row] = jnp.where(valid_b, hb_new, 0.0).astype(outb_ref.dtype)
        return h_f, c_f, h_b, c_b

    carry = lax.fori_loop(
        0, Lt, body, (hf_sc[...], cf_sc[...], hb_sc[...], cb_sc[...]))
    hf_sc[...] = carry[0]
    cf_sc[...] = carry[1]
    hb_sc[...] = carry[2]
    cb_sc[...] = carry[3]


def bilstm_layer(x_parts, lengths2d, p, *, stream_dtype, Bb, Lt, vmem_limit):
    """x_parts: list of time-major (Lp, Bp, d_i) inputs whose feature concat is
    the layer input.  Returns (out_f, out_b), each time-major (Lp, Bp, H)."""
    Lp, Bp = x_parts[0].shape[0], x_parts[0].shape[1]
    H = p["whf"].shape[0]
    G = 4 * H
    nb, ntc = Bp // Bb, Lp // Lt

    # Fused (fwd|bwd) input projection: one stacked matmul per input part,
    # biases folded, f32 accumulation, streamed to the kernel in stream_dtype.
    w_stack = jnp.stack([p["wif"], p["wib"]]).astype(stream_dtype)   # (2, in, 4H)
    b_stack = jnp.stack([p["bf"], p["bb"]]).astype(jnp.float32)      # (2, 1, 4H)
    acc = None
    off = 0
    for xp in x_parts:
        d = xp.shape[-1]
        g = jnp.einsum("lbi,dig->dlbg", xp.astype(stream_dtype),
                       w_stack[:, off:off + d, :],
                       preferred_element_type=jnp.float32)
        acc = g if acc is None else acc + g
        off += d
    gates = (acc + b_stack[:, :, None, :]).astype(stream_dtype)      # (2, Lp, Bp, 4H)

    whf = p["whf"].astype(stream_dtype)
    whb = p["whb"].astype(stream_dtype)
    sb = jnp.dtype(stream_dtype).itemsize

    cost = pl.CostEstimate(
        flops=int(2 * 2 * Lp * Bp * H * G + 12 * Lp * Bp * H),
        transcendentals=int(10 * Lp * Bp * H),
        bytes_accessed=int(sb * 2 * Lp * Bp * (G + H) + sb * 2 * H * G + 4 * Bp),
    )

    grid_spec = pltpu.PrefetchScalarGridSpec(
        num_scalar_prefetch=0,
        grid=(nb, ntc),
        in_specs=[
            pl.BlockSpec((Bb, 1), lambda b, t: (b, 0)),                        # lengths
            pl.BlockSpec((Lt, Bb, G), lambda b, t: (t, b, 0)),                 # fwd gates
            pl.BlockSpec((Lt, Bb, G), lambda b, t, n=ntc: (n - 1 - t, b, 0)),  # bwd gates
            pl.BlockSpec((H, G), lambda b, t: (0, 0)),                         # Whf
            pl.BlockSpec((H, G), lambda b, t: (0, 0)),                         # Whb
        ],
        out_specs=[
            pl.BlockSpec((Lt, Bb, H), lambda b, t: (t, b, 0)),                 # fwd h
            pl.BlockSpec((Lt, Bb, H), lambda b, t, n=ntc: (n - 1 - t, b, 0)),  # bwd h
        ],
        scratch_shapes=[pltpu.VMEM((Bb, H), jnp.float32),
                        pltpu.VMEM((Bb, H), jnp.float32),
                        pltpu.VMEM((Bb, H), jnp.float32),
                        pltpu.VMEM((Bb, H), jnp.float32)],
    )
    out_f, out_b = pl.pallas_call(
        bilstm_kernel,
        grid_spec=grid_spec,
        out_shape=(jax.ShapeDtypeStruct((Lp, Bp, H), stream_dtype),
                   jax.ShapeDtypeStruct((Lp, Bp, H), stream_dtype)),
        compiler_params=pltpu.CompilerParams(
            dimension_semantics=("parallel", "arbitrary"),
            vmem_limit_bytes=vmem_limit),
        cost_estimate=cost,
    )(lengths2d, gates[0], gates[1], whf, whb)
    return out_f, out_b


# -----------------------------------------------------------------------------
# Kernel 2: FastMLAttention (masked softmax over time) + MLLinear MLP.
# Gridded over (batch tile, candidate tile); rnn block index_map is independent
# of the candidate axis so the rnn tile is DMA'd once per batch tile; output is
# a lane-dense (Bb, 128) store.
# -----------------------------------------------------------------------------
def make_attn_mlp_kernel(n_hidden):
    def kernel(rnn_f_ref, rnn_b_ref, mask_ref, awf_ref, awb_ref, *rest):
        w_refs, out_ref = rest[:-1], rest[-1]
        rnn_f = rnn_f_ref[...]                      # (Bb, Lp, H)
        rnn_b = rnn_b_ref[...]
        awf = awf_ref[...]                          # (Bb, Ct, H)
        awb = awb_ref[...]
        Bb, Ct, H = awf.shape

        # scores[b,c,l] = attn_w[b,c,:] . rnn[b,l,:]  (2H contraction in halves)
        scores = (jnp.einsum("bch,blh->bcl", awf, rnn_f,
                             preferred_element_type=jnp.float32)
                  + jnp.einsum("bch,blh->bcl", awb, rnn_b,
                               preferred_element_type=jnp.float32))
        scores = scores + mask_ref[...][:, None, :]          # -inf on padding

        # Masked softmax, normalized AFTER the PV matmul (EUP reciprocal + one
        # Newton step); rows with every score masked yield ctx = 0 (no NaN).
        m = jnp.maximum(jnp.max(scores, axis=-1, keepdims=True), -1e30)
        p = jnp.exp(scores - m)
        s = jnp.sum(p, axis=-1, keepdims=True)
        denom = jnp.where(s > 0.0, s, 1.0)
        inv = pl.reciprocal(denom, approx=True)
        inv = inv * (2.0 - denom * inv)

        pc = p.astype(rnn_f.dtype)
        ctx_f = jnp.einsum("bcl,blh->bch", pc, rnn_f,
                           preferred_element_type=jnp.float32) * inv
        ctx_b = jnp.einsum("bcl,blh->bch", pc, rnn_b,
                           preferred_element_type=jnp.float32) * inv
        hf2 = ctx_f.reshape(Bb * Ct, H)
        hb2 = ctx_b.reshape(Bb * Ct, H)

        if n_hidden == 0:
            # MLLinear with no hidden layer: direct 2H -> 1 output.
            out = (jnp.dot(hf2, w_refs[0][...], preferred_element_type=jnp.float32)
                   + jnp.dot(hb2, w_refs[1][...], preferred_element_type=jnp.float32)
                   + w_refs[2][...])
            out_ref[...] = out.reshape(Bb, Ct)
            return

        # First hidden layer consumes the two context halves directly (no
        # in-kernel lane concat), then relu hidden layers, then the final
        # 1-wide linear as a lane-dense multiply-reduce.
        h = jnp.maximum(
            jnp.dot(hf2, w_refs[0][...], preferred_element_type=jnp.float32)
            + jnp.dot(hb2, w_refs[1][...], preferred_element_type=jnp.float32)
            + w_refs[2][...], 0.0)
        idx = 3
        for _ in range(1, n_hidden):
            W = w_refs[idx][...]
            b = w_refs[idx + 1][...]
            idx += 2
            h = jnp.maximum(
                jnp.dot(h, W, preferred_element_type=jnp.float32) + b, 0.0)
        wo_row = w_refs[idx][...]                   # (1, lin)
        bo = w_refs[idx + 1][...]                   # (1, 1)
        lin = wo_row.shape[1]
        out_ref[...] = (jnp.sum(h.reshape(Bb, Ct, lin) * wo_row[None, :, :],
                                axis=-1) + bo)
    return kernel


def attention_mlp(rnn_f, rnn_b, mask_bias, attw_f, attw_b, mlp_params, *,
                  Bb, Ct, vmem_limit):
    Bp, Lp, H = rnn_f.shape
    Cp = attw_f.shape[1]

    hidden = mlp_params["hidden"]          # list of (W: (in,out), b: (1,out))
    wo, bo = mlp_params["out"]             # (lin, 1), (1, 1)
    n_hidden = len(hidden)

    if n_hidden == 0:
        weight_list = [wo[:H], wo[H:], bo]
    else:
        W0, b0 = hidden[0]
        weight_list = [W0[:H], W0[H:], b0]          # split lhs of first matmul
        for W, b in hidden[1:]:
            weight_list += [W, b]
        weight_list += [wo.T, bo]                   # (1, lin) row + (1, 1)
    weight_specs = [pl.BlockSpec(w.shape, lambda b, c: (0, 0)) for w in weight_list]

    sizes = [2 * H] + [W.shape[1] for W, _ in hidden]
    mlp_flops = 2 * Bp * Cp * (sum(a * b for a, b in zip(sizes[:-1], sizes[1:]))
                               + sizes[-1])
    sb = jnp.dtype(rnn_f.dtype).itemsize
    cost = pl.CostEstimate(
        flops=int(4 * Bp * Cp * Lp * 2 * H + mlp_flops),
        transcendentals=int(Bp * Cp * Lp),
        bytes_accessed=int(sb * (2 * Bp * Lp * H + 2 * Bp * Cp * H)
                           + 4 * (Bp * Lp + Bp * Cp)
                           + 4 * sum(int(w.size) for w in weight_list)),
    )

    grid_spec = pltpu.PrefetchScalarGridSpec(
        num_scalar_prefetch=0,
        grid=(Bp // Bb, Cp // Ct),        # candidate axis innermost: the rnn
        in_specs=[                        # tile is DMA'd once per batch tile.
            pl.BlockSpec((Bb, Lp, H), lambda b, c: (b, 0, 0)),   # rnn fwd half
            pl.BlockSpec((Bb, Lp, H), lambda b, c: (b, 0, 0)),   # rnn bwd half
            pl.BlockSpec((Bb, Lp), lambda b, c: (b, 0)),         # -inf time mask
            pl.BlockSpec((Bb, Ct, H), lambda b, c: (b, c, 0)),   # attn emb fwd
            pl.BlockSpec((Bb, Ct, H), lambda b, c: (b, c, 0)),   # attn emb bwd
        ] + weight_specs,
        out_specs=pl.BlockSpec((Bb, Ct), lambda b, c: (b, c)),
    )
    return pl.pallas_call(
        make_attn_mlp_kernel(n_hidden),
        grid_spec=grid_spec,
        out_shape=jax.ShapeDtypeStruct((Bp, Cp), jnp.float32),
        compiler_params=pltpu.CompilerParams(
            dimension_semantics=("parallel", "parallel"),
            vmem_limit_bytes=vmem_limit),
        cost_estimate=cost,
    )(rnn_f, rnn_b, mask_bias, attw_f, attw_b, *weight_list)


# -----------------------------------------------------------------------------
# Full forward pass (XLA glue: embedding gathers, input projections, padding).
# -----------------------------------------------------------------------------
def fast_attention_rnn_forward(params, inputs, candidates, *,
                               stream_dtype=jnp.float32, time_chunk=None):
    """FastAttentionRNN.forward at inference (dropout = identity).

    inputs:     (B, L) int32 token ids, 0 = padding_idx.
    candidates: (B, C) int32 candidate label ids.
    Returns (B, C) float32 logits.
    """
    B, L = inputs.shape
    C = candidates.shape[1]
    H = params["lstm_layers"][0]["whf"].shape[0]
    stream_bytes = jnp.dtype(stream_dtype).itemsize

    vmem_limit = _vmem_limit_bytes()
    budget = int(vmem_limit * 0.8)
    Bb, Lt = _choose_lstm_tiles(B, L, H, stream_bytes, budget, time_chunk)
    Ct = 128                              # lane-dense (Bb, 128) output tiles
    Bp = _round_up(B, Bb)
    Lp = _round_up(L, Lt)
    Cp = _round_up(C, Ct)

    # Pad batch / time / candidates once (pad token 0 == padding_idx).
    inputs_p = jnp.zeros((Bp, Lp), inputs.dtype).at[:B, :L].set(inputs)
    cands_p = jnp.zeros((Bp, Cp), candidates.dtype).at[:B, :C].set(candidates)

    masks = inputs_p != 0                                             # (Bp, Lp)
    lengths2d = jnp.sum(masks, axis=-1).astype(jnp.int32)[:, None]    # (Bp, 1)

    # Embedding (emb_dropout is identity at inference).
    emb = jnp.take(params["emb"], inputs_p, axis=0)                   # (Bp, Lp, E)
    x_parts = [jnp.transpose(emb, (1, 0, 2))]                         # time-major

    # BiLSTM encoder stack; layer outputs stay as separate fwd/bwd halves so no
    # feature concat is ever materialized in HBM.
    for layer_params in params["lstm_layers"]:
        x_parts = list(bilstm_layer(x_parts, lengths2d, layer_params,
                                    stream_dtype=stream_dtype,
                                    Bb=Bb, Lt=Lt, vmem_limit=vmem_limit))

    # TODO(synk): fold this relayout into the attention kernel (needs an
    # in-kernel major-dim transpose or an online-softmax over time chunks).
    rnn_f = jnp.transpose(x_parts[0], (1, 0, 2))                      # (Bp, Lp, H)
    rnn_b = jnp.transpose(x_parts[1], (1, 0, 2))

    # FastMLAttention (parallel_attn=True: per-candidate attention embedding).
    attn_w = jnp.take(params["attn_emb"], cands_p, axis=0).astype(stream_dtype)
    attw_f = attn_w[..., :H]
    attw_b = attn_w[..., H:]
    mask_bias = jnp.where(masks, 0.0, -jnp.inf).astype(jnp.float32)   # (Bp, Lp)

    Bb_a = _choose_attn_batch_tile(Bb, Lp, H, Ct, stream_bytes, budget)
    out = attention_mlp(rnn_f, rnn_b, mask_bias, attw_f, attw_b, params["mlp"],
                        Bb=Bb_a, Ct=Ct, vmem_limit=vmem_limit)
    return out[:B, :C]


# -----------------------------------------------------------------------------
# Pure-JAX reference (correctness check).
# -----------------------------------------------------------------------------
def _ref_lstm_dir(x, lengths, wi, wh, b, H, reverse):
    B, L, _ = x.shape
    h = jnp.zeros((B, H), jnp.float32)
    c = jnp.zeros((B, H), jnp.float32)
    outs = [None] * L
    ts = range(L - 1, -1, -1) if reverse else range(L)
    for t in ts:
        gates = x[:, t] @ wi + h @ wh + b
        i = jax.nn.sigmoid(gates[:, :H])
        f = jax.nn.sigmoid(gates[:, H:2 * H])
        g = jnp.tanh(gates[:, 2 * H:3 * H])
        o = jax.nn.sigmoid(gates[:, 3 * H:])
        c_new = f * c + i * g
        h_new = o * jnp.tanh(c_new)
        valid = (t < lengths)[:, None].astype(jnp.float32)
        h = valid * h_new + (1.0 - valid) * h
        c = valid * c_new + (1.0 - valid) * c
        outs[t] = valid * h
    return jnp.stack(outs, axis=1)


def reference_forward(params, inputs, candidates):
    emb = params["emb"][inputs]
    masks = inputs != 0
    lengths = masks.sum(-1).astype(jnp.int32)
    h = emb.astype(jnp.float32)
    for lyr in params["lstm_layers"]:
        H = lyr["whf"].shape[0]
        of = _ref_lstm_dir(h, lengths, lyr["wif"], lyr["whf"], lyr["bf"], H, False)
        ob = _ref_lstm_dir(h, lengths, lyr["wib"], lyr["whb"], lyr["bb"], H, True)
        h = jnp.concatenate([of, ob], axis=-1)
    rnn_out = h
    attn_w = params["attn_emb"][candidates]
    scores = jnp.einsum("bch,blh->bcl", attn_w, rnn_out)
    scores = jnp.where(masks[:, None, :], scores, -jnp.inf)
    p = jax.nn.softmax(scores, axis=-1)
    x = jnp.einsum("bcl,blh->bch", p, rnn_out)
    for W, b in params["mlp"]["hidden"]:
        x = jnp.maximum(x @ W + b, 0.0)
    wo, bo = params["mlp"]["out"]
    return (x @ wo + bo)[..., 0]


# -----------------------------------------------------------------------------
# Deterministic parameter init (shapes from the module __init__).
# -----------------------------------------------------------------------------
def init_params(key, vocab_size, emb_size, hidden_size, layers_num,
                linear_size, labels_num):
    keys = iter(jax.random.split(key, 64))

    def nrm(shape, scale=0.1):
        return (scale * jax.random.normal(next(keys), shape)).astype(jnp.float32)

    emb = nrm((vocab_size, emb_size)).at[0].set(0.0)   # padding_idx=0 -> zero row

    lstm_layers = []
    in_size = emb_size
    for _ in range(layers_num):
        lstm_layers.append({
            "wif": nrm((in_size, 4 * hidden_size)),
            "whf": nrm((hidden_size, 4 * hidden_size)),
            "bf": nrm((1, 4 * hidden_size)),   # bias_ih + bias_hh (combined)
            "wib": nrm((in_size, 4 * hidden_size)),
            "whb": nrm((hidden_size, 4 * hidden_size)),
            "bb": nrm((1, 4 * hidden_size)),
        })
        in_size = 2 * hidden_size

    attn_emb = nrm((labels_num + 1, 2 * hidden_size))

    sizes = [2 * hidden_size] + list(linear_size)
    hidden = [(nrm((a, b)), nrm((1, b))) for a, b in zip(sizes[:-1], sizes[1:])]
    out_w, out_b = nrm((sizes[-1], 1)), nrm((1, 1))

    return {"emb": emb, "lstm_layers": lstm_layers, "attn_emb": attn_emb,
            "mlp": {"hidden": hidden, "out": (out_w, out_b)}}


if __name__ == "__main__":
    # Small shapes consistent with FastAttentionRNN.
    B, L = 2, 12
    vocab, E, H, layers_num = 50, 16, 32, 2
    labels_num, C = 20, 8
    linear_size = [32]

    key = jax.random.PRNGKey(0)
    kp, ki, kc = jax.random.split(key, 3)
    params = init_params(kp, vocab, E, H, layers_num, linear_size, labels_num)

    inputs = jax.random.randint(ki, (B, L), 1, vocab, dtype=jnp.int32)
    inputs = inputs.at[1, 9:].set(0)            # variable lengths (padding_idx=0)
    candidates = jax.random.randint(kc, (B, C), 0, labels_num + 1, dtype=jnp.int32)

    ref = reference_forward(params, inputs, candidates)

    # f32 streams, chunked time grid (Lt=8 -> 2 chunks): tight correctness check.
    out = jax.block_until_ready(
        fast_attention_rnn_forward(params, inputs, candidates,
                                   stream_dtype=jnp.float32, time_chunk=8))
    assert out.shape == (B, C)
    assert bool(jnp.allclose(out, ref, rtol=2e-3, atol=2e-3)), \
        f"f32 mismatch: {jnp.max(jnp.abs(out - ref))}"

    # bf16 streamed activations / recurrent weights (recommended on v6e/v7x);
    # cell state and accumulation stay f32, so only a small drift vs the ref.
    out_bf16 = jax.block_until_ready(
        fast_attention_rnn_forward(params, inputs, candidates,
                                   stream_dtype=jnp.bfloat16, time_chunk=8))
    assert out_bf16.shape == (B, C)
    assert bool(jnp.allclose(out_bf16, ref, rtol=5e-2, atol=5e-2)), \
        f"bf16 mismatch: {jnp.max(jnp.abs(out_bf16 - ref))}"

    print("KERNEL_OK")
</pallas_src>

<mosaic_0001>
module attributes {stable_mosaic.version = 11 : i64} {
  func.func @bilstm_kernel(%arg0: i32, %arg1: i32, %arg2: memref<16x1xi32, #tpu.memory_space<vmem>>, %arg3: memref<8x16x128xf32, #tpu.memory_space<vmem>>, %arg4: memref<8x16x128xf32, #tpu.memory_space<vmem>>, %arg5: memref<32x128xf32, #tpu.memory_space<vmem>>, %arg6: memref<32x128xf32, #tpu.memory_space<vmem>>, %arg7: memref<8x16x32xf32, #tpu.memory_space<vmem>>, %arg8: memref<8x16x32xf32, #tpu.memory_space<vmem>>, %arg9: memref<16x32xf32, #tpu.memory_space<vmem>>, %arg10: memref<16x32xf32, #tpu.memory_space<vmem>>, %arg11: memref<16x32xf32, #tpu.memory_space<vmem>>, %arg12: memref<16x32xf32, #tpu.memory_space<vmem>>) attributes {dimension_semantics = [#tpu.dimension_semantics<parallel>, #tpu.dimension_semantics<arbitrary>], iteration_bounds = array<i64: 1, 2>, scalar_prefetch = 0 : i64, scratch_operands = 4 : i64, tpu.core_type = #tpu.core_type<tc>, window_params = [{transform_indices = @transform_0, window_bounds = array<i64: 16, 1>}, {transform_indices = @transform_1, window_bounds = array<i64: 8, 16, 128>}, {transform_indices = @transform_2, window_bounds = array<i64: 8, 16, 128>}, {pipeline_mode = #tpu.pipeline_mode<synchronous>, transform_indices = @transform_3, window_bounds = array<i64: 32, 128>}, {pipeline_mode = #tpu.pipeline_mode<synchronous>, transform_indices = @transform_4, window_bounds = array<i64: 32, 128>}, {transform_indices = @transform_5, window_bounds = array<i64: 8, 16, 32>}, {transform_indices = @transform_6, window_bounds = array<i64: 8, 16, 32>}]} {
    %c0_i32 = arith.constant 0 : i32
    %0 = arith.cmpi eq, %arg1, %c0_i32 : i32
    %1 = arith.extui %0 : i1 to i32
    %c0_i32_0 = arith.constant 0 : i32
    %2 = arith.cmpi ne, %1, %c0_i32_0 : i32
    scf.if %2 {
      %cst = arith.constant 0.000000e+00 : f32
      %19 = vector.broadcast %cst : f32 to vector<16x32xf32>
      %c0_27 = arith.constant 0 : index
      %c0_28 = arith.constant 0 : index
      %20 = vector.load %arg9[%c0_27, %c0_28] : memref<16x32xf32, #tpu.memory_space<vmem>>, vector<16x32xf32>
      tpu.vector_store %arg9[%c0_27, %c0_28], %19 {strides = array<i32>} : memref<16x32xf32, #tpu.memory_space<vmem>>, vector<16x32xf32>,
      %cst_29 = arith.constant 0.000000e+00 : f32
      %21 = vector.broadcast %cst_29 : f32 to vector<16x32xf32>
      %c0_30 = arith.constant 0 : index
      %c0_31 = arith.constant 0 : index
      %22 = vector.load %arg10[%c0_30, %c0_31] : memref<16x32xf32, #tpu.memory_space<vmem>>, vector<16x32xf32>
      tpu.vector_store %arg10[%c0_30, %c0_31], %21 {strides = array<i32>} : memref<16x32xf32, #tpu.memory_space<vmem>>, vector<16x32xf32>,
      %cst_32 = arith.constant 0.000000e+00 : f32
      %23 = vector.broadcast %cst_32 : f32 to vector<16x32xf32>
      %c0_33 = arith.constant 0 : index
      %c0_34 = arith.constant 0 : index
      %24 = vector.load %arg11[%c0_33, %c0_34] : memref<16x32xf32, #tpu.memory_space<vmem>>, vector<16x32xf32>
      tpu.vector_store %arg11[%c0_33, %c0_34], %23 {strides = array<i32>} : memref<16x32xf32, #tpu.memory_space<vmem>>, vector<16x32xf32>,
      %cst_35 = arith.constant 0.000000e+00 : f32
      %25 = vector.broadcast %cst_35 : f32 to vector<16x32xf32>
      %c0_36 = arith.constant 0 : index
      %c0_37 = arith.constant 0 : index
      %26 = vector.load %arg12[%c0_36, %c0_37] : memref<16x32xf32, #tpu.memory_space<vmem>>, vector<16x32xf32>
      tpu.vector_store %arg12[%c0_36, %c0_37], %25 {strides = array<i32>} : memref<16x32xf32, #tpu.memory_space<vmem>>, vector<16x32xf32>,
    } else {
    }
    %c0 = arith.constant 0 : index
    %c0_1 = arith.constant 0 : index
    %3 = vector.load %arg2[%c0, %c0_1] : memref<16x1xi32, #tpu.memory_space<vmem>>, vector<16x1xi32>
    %c0_2 = arith.constant 0 : index
    %c0_3 = arith.constant 0 : index
    %4 = vector.load %arg5[%c0_2, %c0_3] : memref<32x128xf32, #tpu.memory_space<vmem>>, vector<32x128xf32>
    %c0_4 = arith.constant 0 : index
    %c0_5 = arith.constant 0 : index
    %5 = vector.load %arg6[%c0_4, %c0_5] : memref<32x128xf32, #tpu.memory_space<vmem>>, vector<32x128xf32>
    %c8_i32 = arith.constant 8 : i32
    %6 = arith.muli %arg1, %c8_i32 : i32
    %c1_i32 = arith.constant 1 : i32
    %7 = arith.subi %c1_i32, %arg1 : i32
    %c8_i32_6 = arith.constant 8 : i32
    %8 = arith.muli %7, %c8_i32_6 : i32
    %c0_7 = arith.constant 0 : index
    %c0_8 = arith.constant 0 : index
    %9 = vector.load %arg9[%c0_7, %c0_8] : memref<16x32xf32, #tpu.memory_space<vmem>>, vector<16x32xf32>
    %c0_9 = arith.constant 0 : index
    %c0_10 = arith.constant 0 : index
    %10 = vector.load %arg10[%c0_9, %c0_10] : memref<16x32xf32, #tpu.memory_space<vmem>>, vector<16x32xf32>
    %c0_11 = arith.constant 0 : index
    %c0_12 = arith.constant 0 : index
    %11 = vector.load %arg11[%c0_11, %c0_12] : memref<16x32xf32, #tpu.memory_space<vmem>>, vector<16x32xf32>
    %c0_13 = arith.constant 0 : index
    %c0_14 = arith.constant 0 : index
    %12 = vector.load %arg12[%c0_13, %c0_14] : memref<16x32xf32, #tpu.memory_space<vmem>>, vector<16x32xf32>
    %c0_i32_15 = arith.constant 0 : i32
    %c8_i32_16 = arith.constant 8 : i32
    %13 = arith.addi %c0_i32_15, %c8_i32_16 : i32
    %c1_i32_17 = arith.constant 1 : i32
    %14:4 = scf.for %arg13 = %c0_i32_15 to %13 step %c1_i32_17 iter_args(%arg14 = %9, %arg15 = %10, %arg16 = %11, %arg17 = %12) -> (vector<16x32xf32>, vector<16x32xf32>, vector<16x32xf32>, vector<16x32xf32>)  : i32 {
      %19 = arith.index_cast %arg13 : i32 to index
      %c0_27 = arith.constant 0 : index
      %c0_28 = arith.constant 0 : index
      %20 = vector.load %arg3[%19, %c0_27, %c0_28] : memref<8x16x128xf32, #tpu.memory_space<vmem>>, vector<1x16x128xf32>
      %21 = vector.shape_cast %20 : vector<1x16x128xf32> to vector<16x128xf32>
      %cst = arith.constant dense<0.000000e+00> : vector<16x128xf32>
      %22 = tpu.matmul %arg14, %4, %cst {dimension_numbers = #tpu.dot_dimension_numbers<[1], [0], [0], [1], [0, 0, 1, 1], [], []>} : vector<16x32xf32>, vector<32x128xf32>, vector<16x128xf32> -> vector<16x128xf32>
      %23 = arith.addf %21, %22 : vector<16x128xf32>
      %24 = vector.extract_strided_slice %23 {offsets = [0, 0], sizes = [16, 32], strides = [1, 1]} : vector<16x128xf32> to vector<16x32xf32>
      %25 = arith.negf %24 : vector<16x32xf32>
      %26 = math.exp %25 : vector<16x32xf32>
      %cst_29 = arith.constant 1.000000e+00 : f32
      %27 = vector.broadcast %cst_29 : f32 to vector<16x32xf32>
      %28 = arith.addf %27, %26 : vector<16x32xf32>
      %29 = arith.divf %27, %28 : vector<16x32xf32>
      %30 = vector.extract_strided_slice %23 {offsets = [0, 32], sizes = [16, 32], strides = [1, 1]} : vector<16x128xf32> to vector<16x32xf32>
      %31 = arith.negf %30 : vector<16x32xf32>
      %32 = math.exp %31 : vector<16x32xf32>
      %cst_30 = arith.constant 1.000000e+00 : f32
      %33 = vector.broadcast %cst_30 : f32 to vector<16x32xf32>
      %34 = arith.addf %33, %32 : vector<16x32xf32>
      %35 = arith.divf %33, %34 : vector<16x32xf32>
      %36 = vector.extract_strided_slice %23 {offsets = [0, 64], sizes = [16, 32], strides = [1, 1]} : vector<16x128xf32> to vector<16x32xf32>
      %37 = math.tanh %36 : vector<16x32xf32>
      %38 = vector.extract_strided_slice %23 {offsets = [0, 96], sizes = [16, 32], strides = [1, 1]} : vector<16x128xf32> to vector<16x32xf32>
      %39 = arith.negf %38 : vector<16x32xf32>
      %40 = math.exp %39 : vector<16x32xf32>
      %cst_31 = arith.constant 1.000000e+00 : f32
      %41 = vector.broadcast %cst_31 : f32 to vector<16x32xf32>
      %42 = arith.addf %41, %40 : vector<16x32xf32>
      %43 = arith.divf %41, %42 : vector<16x32xf32>
      %44 = arith.mulf %35, %arg15 : vector<16x32xf32>
      %45 = arith.mulf %29, %37 : vector<16x32xf32>
      %46 = arith.addf %44, %45 : vector<16x32xf32>
      %47 = math.tanh %46 : vector<16x32xf32>
      %48 = arith.mulf %43, %47 : vector<16x32xf32>
      %49 = arith.addi %6, %arg13 : i32
      %50 = vector.broadcast %49 : i32 to vector<16x1xi32>
      %51 = arith.cmpi slt, %50, %3 : vector<16x1xi32>
      %52 = vector.shape_cast %51 : vector<16x1xi1> to vector<16x1xi1>
      %53 = vector.broadcast %52 : vector<16x1xi1> to vector<16x32xi1>
      %54 = arith.select %53, %48, %arg14 : vector<16x32xi1>, vector<16x32xf32>
      %55 = vector.shape_cast %51 : vector<16x1xi1> to vector<16x1xi1>
      %56 = vector.broadcast %55 : vector<16x1xi1> to vector<16x32xi1>
      %57 = arith.select %56, %46, %arg15 : vector<16x32xi1>, vector<16x32xf32>
      %cst_32 = arith.constant 0.000000e+00 : f32
      %58 = vector.shape_cast %51 : vector<16x1xi1> to vector<16x1xi1>
      %59 = vector.broadcast %58 : vector<16x1xi1> to vector<16x32xi1>
      %60 = vector.broadcast %cst_32 : f32 to vector<16x32xf32>
      %61 = arith.select %59, %48, %60 : vector<16x32xi1>, vector<16x32xf32>
      %62 = arith.index_cast %arg13 : i32 to index
      %c0_33 = arith.constant 0 : index
      %c0_34 = arith.constant 0 : index
      %63 = vector.load %arg7[%62, %c0_33, %c0_34] : memref<8x16x32xf32, #tpu.memory_space<vmem>>, vector<1x16x32xf32>
      %64 = vector.shape_cast %63 : vector<1x16x32xf32> to vector<16x32xf32>
      %65 = vector.shape_cast %61 : vector<16x32xf32> to vector<1x16x32xf32>
      tpu.vector_store %arg7[%62, %c0_33, %c0_34], %65 {strides = array<i32>} : memref<8x16x32xf32, #tpu.memory_space<vmem>>, vector<1x16x32xf32>,
      %c7_i32 = arith.constant 7 : i32
      %66 = arith.subi %c7_i32, %arg13 : i32
      %67 = arith.index_cast %66 : i32 to index
      %c0_35 = arith.constant 0 : index
      %c0_36 = arith.constant 0 : index
      %68 = vector.load %arg4[%67, %c0_35, %c0_36] : memref<8x16x128xf32, #tpu.memory_space<vmem>>, vector<1x16x128xf32>
      %69 = vector.shape_cast %68 : vector<1x16x128xf32> to vector<16x128xf32>
      %cst_37 = arith.constant dense<0.000000e+00> : vector<16x128xf32>
      %70 = tpu.matmul %arg16, %5, %cst_37 {dimension_numbers = #tpu.dot_dimension_numbers<[1], [0], [0], [1], [0, 0, 1, 1], [], []>} : vector<16x32xf32>, vector<32x128xf32>, vector<16x128xf32> -> vector<16x128xf32>
      %71 = arith.addf %69, %70 : vector<16x128xf32>
      %72 = vector.extract_strided_slice %71 {offsets = [0, 0], sizes = [16, 32], strides = [1, 1]} : vector<16x128xf32> to vector<16x32xf32>
      %73 = arith.negf %72 : vector<16x32xf32>
      %74 = math.exp %73 : vector<16x32xf32>
      %cst_38 = arith.constant 1.000000e+00 : f32
      %75 = vector.broadcast %cst_38 : f32 to vector<16x32xf32>
      %76 = arith.addf %75, %74 : vector<16x32xf32>
      %77 = arith.divf %75, %76 : vector<16x32xf32>
      %78 = vector.extract_strided_slice %71 {offsets = [0, 32], sizes = [16, 32], strides = [1, 1]} : vector<16x128xf32> to vector<16x32xf32>
      %79 = arith.negf %78 : vector<16x32xf32>
      %80 = math.exp %79 : vector<16x32xf32>
      %cst_39 = arith.constant 1.000000e+00 : f32
      %81 = vector.broadcast %cst_39 : f32 to vector<16x32xf32>
      %82 = arith.addf %81, %80 : vector<16x32xf32>
      %83 = arith.divf %81, %82 : vector<16x32xf32>
      %84 = vector.extract_strided_slice %71 {offsets = [0, 64], sizes = [16, 32], strides = [1, 1]} : vector<16x128xf32> to vector<16x32xf32>
      %85 = math.tanh %84 : vector<16x32xf32>
      %86 = vector.extract_strided_slice %71 {offsets = [0, 96], sizes = [16, 32], strides = [1, 1]} : vector<16x128xf32> to vector<16x32xf32>
      %87 = arith.negf %86 : vector<16x32xf32>
      %88 = math.exp %87 : vector<16x32xf32>
      %cst_40 = arith.constant 1.000000e+00 : f32
      %89 = vector.broadcast %cst_40 : f32 to vector<16x32xf32>
      %90 = arith.addf %89, %88 : vector<16x32xf32>
      %91 = arith.divf %89, %90 : vector<16x32xf32>
      %92 = arith.mulf %83, %arg17 : vector<16x32xf32>
      %93 = arith.mulf %77, %85 : vector<16x32xf32>
      %94 = arith.addf %92, %93 : vector<16x32xf32>
      %95 = math.tanh %94 : vector<16x32xf32>
      %96 = arith.mulf %91, %95 : vector<16x32xf32>
      %97 = arith.addi %8, %66 : i32
      %98 = vector.broadcast %97 : i32 to vector<16x1xi32>
      %99 = arith.cmpi slt, %98, %3 : vector<16x1xi32>
      %100 = vector.shape_cast %99 : vector<16x1xi1> to vector<16x1xi1>
      %101 = vector.broadcast %100 : vector<16x1xi1> to vector<16x32xi1>
      %102 = arith.select %101, %96, %arg16 : vector<16x32xi1>, vector<16x32xf32>
      %103 = vector.shape_cast %99 : vector<16x1xi1> to vector<16x1xi1>
      %104 = vector.broadcast %103 : vector<16x1xi1> to vector<16x32xi1>
      %105 = arith.select %104, %94, %arg17 : vector<16x32xi1>, vector<16x32xf32>
      %cst_41 = arith.constant 0.000000e+00 : f32
      %106 = vector.shape_cast %99 : vector<16x1xi1> to vector<16x1xi1>
      %107 = vector.broadcast %106 : vector<16x1xi1> to vector<16x32xi1>
      %108 = vector.broadcast %cst_41 : f32 to vector<16x32xf32>
      %109 = arith.select %107, %96, %108 : vector<16x32xi1>, vector<16x32xf32>
      %110 = arith.index_cast %66 : i32 to index
      %c0_42 = arith.constant 0 : index
      %c0_43 = arith.constant 0 : index
      %111 = vector.load %arg8[%110, %c0_42, %c0_43] : memref<8x16x32xf32, #tpu.memory_space<vmem>>, vector<1x16x32xf32>
      %112 = vector.shape_cast %111 : vector<1x16x32xf32> to vector<16x32xf32>
      %113 = vector.shape_cast %109 : vector<16x32xf32> to vector<1x16x32xf32>
      tpu.vector_store %arg8[%110, %c0_42, %c0_43], %113 {strides = array<i32>} : memref<8x16x32xf32, #tpu.memory_space<vmem>>, vector<1x16x32xf32>,
      scf.yield %54, %57, %102, %105 : vector<16x32xf32>, vector<16x32xf32>, vector<16x32xf32>, vector<16x32xf32>
    }
    %c8_i32_18 = arith.constant 8 : i32
    %c0_19 = arith.constant 0 : index
    %c0_20 = arith.constant 0 : index
    %15 = vector.load %arg9[%c0_19, %c0_20] : memref<16x32xf32, #tpu.memory_space<vmem>>, vector<16x32xf32>
    tpu.vector_store %arg9[%c0_19, %c0_20], %14#0 {strides = array<i32>} : memref<16x32xf32, #tpu.memory_space<vmem>>, vector<16x32xf32>,
    %c0_21 = arith.constant 0 : index
    %c0_22 = arith.constant 0 : index
    %16 = vector.load %arg10[%c0_21, %c0_22] : memref<16x32xf32, #tpu.memory_space<vmem>>, vector<16x32xf32>
    tpu.vector_store %arg10[%c0_21, %c0_22], %14#1 {strides = array<i32>} : memref<16x32xf32, #tpu.memory_space<vmem>>, vector<16x32xf32>,
    %c0_23 = arith.constant 0 : index
    %c0_24 = arith.constant 0 : index
    %17 = vector.load %arg11[%c0_23, %c0_24] : memref<16x32xf32, #tpu.memory_space<vmem>>, vector<16x32xf32>
    tpu.vector_store %arg11[%c0_23, %c0_24], %14#2 {strides = array<i32>} : memref<16x32xf32, #tpu.memory_space<vmem>>, vector<16x32xf32>,
    %c0_25 = arith.constant 0 : index
    %c0_26 = arith.constant 0 : index
    %18 = vector.load %arg12[%c0_25, %c0_26] : memref<16x32xf32, #tpu.memory_space<vmem>>, vector<16x32xf32>
    tpu.vector_store %arg12[%c0_25, %c0_26], %14#3 {strides = array<i32>} : memref<16x32xf32, #tpu.memory_space<vmem>>, vector<16x32xf32>,
    return
  }
  func.func @transform_0(%arg0: i32, %arg1: i32) -> (i32, i32) {
    %c0_i32 = arith.constant 0 : i32
    %c0_i32_0 = arith.constant 0 : i32
    return %arg0, %c0_i32 : i32, i32
  }
  func.func @transform_1(%arg0: i32, %arg1: i32) -> (i32, i32, i32) {
    %c0_i32 = arith.constant 0 : i32
    %c0_i32_0 = arith.constant 0 : i32
    return %arg1, %arg0, %c0_i32 : i32, i32, i32
  }
  func.func @transform_2(%arg0: i32, %arg1: i32) -> (i32, i32, i32) {
    %c1_i32 = arith.constant 1 : i32
    %0 = arith.subi %c1_i32, %arg1 : i32
    %c0_i32 = arith.constant 0 : i32
    %c0_i32_0 = arith.constant 0 : i32
    return %0, %arg0, %c0_i32 : i32, i32, i32
  }
  func.func @transform_3(%arg0: i32, %arg1: i32) -> (i32, i32) {
    %c0_i32 = arith.constant 0 : i32
    %c0_i32_0 = arith.constant 0 : i32
    %c0_i32_1 = arith.constant 0 : i32
    return %c0_i32, %c0_i32_0 : i32, i32
  }
  func.func @transform_4(%arg0: i32, %arg1: i32) -> (i32, i32) {
    %c0_i32 = arith.constant 0 : i32
    %c0_i32_0 = arith.constant 0 : i32
    %c0_i32_1 = arith.constant 0 : i32
    return %c0_i32, %c0_i32_0 : i32, i32
  }
  func.func @transform_5(%arg0: i32, %arg1: i32) -> (i32, i32, i32) {
    %c0_i32 = arith.constant 0 : i32
    %c0_i32_0 = arith.constant 0 : i32
    return %arg1, %arg0, %c0_i32 : i32, i32, i32
  }
  func.func @transform_6(%arg0: i32, %arg1: i32) -> (i32, i32, i32) {
    %c1_i32 = arith.constant 1 : i32
    %0 = arith.subi %c1_i32, %arg1 : i32
    %c0_i32 = arith.constant 0 : i32
    %c0_i32_0 = arith.constant 0 : i32
    return %0, %arg0, %c0_i32 : i32, i32, i32
  }
}

</mosaic_0001>

<llo_original>
// kernel: tpu_custom_call.1
$region0: #{tpu_custom_call.1}
  #allocation0 [shape = 'u32[]', space=smem, size = 0x4, offset = 0x4, fixed_abs, tag = 'smem constant byte address 0x4 - core index']
  #allocation1 [shape = 'u32[72,128]{1,0:T(1,128)}', space=vmem, size = 0x9000, scoped, tag = 'internal scratch']
  #allocation2 [shape = 'f32[16,32]{1,0:T(8,128)}', space=vmem, size = 0x2000, scoped, tag = 'scratch operand']
  #allocation3 [shape = 'f32[16,32]{1,0:T(8,128)}', space=vmem, size = 0x2000, scoped, tag = 'scratch operand']
  #allocation4 [shape = 'f32[16,32]{1,0:T(8,128)}', space=vmem, size = 0x2000, scoped, tag = 'scratch operand']
  #allocation5 [shape = 'f32[16,32]{1,0:T(8,128)}', space=vmem, size = 0x2000, scoped, tag = 'scratch operand']
  %s0 = inlined_call_operand.vmem [shape: s32[16,1], index: 0, kind: input, shape index: {}]
  %s1 = inlined_call_operand.hbm [shape: f32[16,16,128], index: 1, kind: input, shape index: {}]
  %s2 = inlined_call_operand.hbm [shape: f32[16,16,128], index: 2, kind: input, shape index: {}]
  %s3 = inlined_call_operand.hbm [shape: f32[32,128], index: 3, kind: input, shape index: {}]
  %s4 = inlined_call_operand.hbm [shape: f32[32,128], index: 4, kind: input, shape index: {}]
  %s5 = inlined_call_operand.hbm [shape: f32[16,16,32], index: 5, kind: output, shape index: {0}]
  %s6 = inlined_call_operand.hbm [shape: f32[16,16,32], index: 6, kind: output, shape index: {1}]
  %7 = xla_tuple %s5, %s6
  %s8 = sld [smem:[#allocation0]]
  $region88: #{tpu_custom_call.1} parent=0
    _
  %s10 = ssub.s32 1, %s8
  %s11 = scalar_select 0, %s10, %s8
  $region1: #{tpu_custom_call.1} parent=0
    #allocation6 [shape = 'u8[131072]{0}', space=vmem, size = 0x20000, scoped, tag = 'input window, operand 1']
    #allocation7 [shape = 's32[2]{0}', space=sflag, size = 0x8, scoped, tag = 'scoped memory for tpu_custom_call.1']
    #allocation8 [shape = 's32[2]{0}', space=sflag, size = 0x8, scoped, tag = 'scoped memory for tpu_custom_call.1']
    #allocation9 [shape = 'u8[131072]{0}', space=vmem, size = 0x20000, scoped, tag = 'input window, operand 2']
    #allocation10 [shape = 's32[2]{0}', space=sflag, size = 0x8, scoped, tag = 'scoped memory for tpu_custom_call.1']
    #allocation11 [shape = 'u8[16384]{0}', space=vmem, size = 0x4000, scoped, tag = 'input window, operand 3, single buffered']
    #allocation12 [shape = 'u8[16384]{0}', space=vmem, size = 0x4000, scoped, tag = 'input window, operand 4, single buffered']
    #allocation13 [shape = 's32[1]{0}', space=sflag, size = 0x4, scoped, tag = 'scoped memory for tpu_custom_call.1']
    #allocation14 [shape = 'u8[131072]{0}', space=vmem, size = 0x20000, scoped, tag = 'output window, operand 0']
    #allocation15 [shape = 'u8[131072]{0}', space=vmem, size = 0x20000, scoped, tag = 'output window, operand 1']
    #allocation16 [shape = 's32[2]{0}', space=sflag, size = 0x8, scoped, tag = 'scoped memory for tpu_custom_call.1']
    %12 = vsyncpa [#allocation7], 0
    %s13 = scalar_lea.sflag [#allocation7], 1
    %14 = vsyncpa %s13, 0
    %15 = vsyncpa [#allocation10], 0
    %s16 = scalar_lea.sflag [#allocation10], 1
    %17 = vsyncpa %s16, 0
    %18 = vsyncpa [#allocation13], 0
    %19 = vsyncpa [#allocation8], 0
    %s20 = scalar_lea.sflag [#allocation8], 1
    %21 = vsyncpa %s20, 0
    %22 = vsyncpa [#allocation16], 0
    %s23 = scalar_lea.sflag [#allocation16], 1
    %24 = vsyncpa %s23, 0
    loop: start=0, step=1, limit=4
    $region2: #{tpu_custom_call.1} parent=1 // loop_pre_header
      _
    $region3: #{tpu_custom_call.1} parent=1 // loop_header
      %s26 = sphi 0, %s30
      %p27 = scmp.ge.s32.totalorder %s26, 4
      %s33 = sphi 0, %s45
      %s34 = sphi 0, %s41
      %s35 = sphi 0, %s33
      %s36 = sphi 0, %s34
      %s37 = sphi 0, %s35
      %s38 = sphi 0, %s36
      %s48 = sphi 0, %s50
      %s51 = sphi 0, %s48
      %s52 = sphi 0, %s51
      %s68 = sphi 0, %s52
      %s76 = sphi 0, %s78
      %s79 = sphi 0, %s76
      %s80 = sphi 0, %s79
      %s96 = sphi 0, %s80
      %s106 = sphi 0, %s108
      %s109 = sphi 0, %s106
      %s110 = sphi 0, %s109
      %s126 = sphi 0, %s110
      %s130 = sphi 0, %s130
      %s132 = sphi 0, %s130
      %s133 = sphi 0, %s132
      %s147 = sphi 0, %s133
      %s151 = sphi 0, %s151
      %s153 = sphi 0, %s151
      %s154 = sphi 0, %s153
      %s168 = sphi 0, %s154
      %s176 = sphi 0, %s178
      %s179 = sphi 0, %s176
      %s180 = sphi 0, %s179
      %s196 = sphi 0, %s180
      %s206 = sphi 0, %s208
      %s209 = sphi 0, %s206
      %s210 = sphi 0, %s209
      %s226 = sphi 0, %s210
    $region4: #{tpu_custom_call.1} parent=1 // loop_header_branch
      %29 = sbr.rel (%p27) target = $region8
    $region5: #{tpu_custom_call.1} parent=1 // loop_body
      %s31 = ssub.s32 %s26, 1
      %s32 = ssub.s32 %s26, 2
      %s39 = sadd.s32 1, %s34
      %p40 = scmp.ge.s32.totalorder %s39, 2
      %s41 = scalar_select %p40, 0, %s39
      %s42 = sadd.s32 1, %s33
      %s43 = scalar_select %p40, %s42, %s33
      %p44 = scmp.ge.s32.totalorder %s43, 1
      %s45 = scalar_select %p44, 0, %s43
      %s46 = ssub.s32 %s33, %s45
      %p47 = scmp.eq.s32.totalorder %s46, 0
      %s49 = sadd.s32 %s48, 1
      %s50 = scalar_select %p47, %s48, %s49
      %p53 = pneg %p47
      %p54 = scmp.eq.s32.totalorder %s26, 1
      %p55 = por %p53, %p54
      %p56 = scmp.ne.s32.totalorder %s48, %s51
      %p57 = scmp.eq.s32.totalorder %s26, 0
      %p58 = por %p56, %p57
      %p59 = scmp.ne.s32.totalorder %s48, %s51
      %p60 = scmp.eq.s32.totalorder %s31, 1
      %p61 = por %p59, %p60
      %p62 = scmp.ne.s32.totalorder %s51, %s52
      %p63 = scmp.eq.s32.totalorder %s31, 0
      %p64 = por %p62, %p63
      %p65 = scmp.ne.s32.totalorder %s51, %s52
      %p66 = scmp.eq.s32.totalorder %s32, 1
      %p67 = por %p65, %p66
      %p69 = scmp.ne.s32.totalorder %s52, %s68
      %p70 = scmp.eq.s32.totalorder %s32, 0
      %p71 = por %p69, %p70
      %s72 = ssub.s32 %s34, %s41
      %s73 = ssub.s32 %s33, %s45
      %s74 = sor.u32 %s72, %s73
      %p75 = scmp.eq.s32.totalorder %s74, 0
      %s77 = sadd.s32 %s76, 1
      %s78 = scalar_select %p75, %s76, %s77
      %p81 = pneg %p75
      %p82 = scmp.eq.s32.totalorder %s26, 1
      %p83 = por %p81, %p82
      %p84 = scmp.ne.s32.totalorder %s76, %s79
      %p85 = scmp.eq.s32.totalorder %s26, 0
      %p86 = por %p84, %p85
      %p87 = scmp.ne.s32.totalorder %s76, %s79
      %p88 = scmp.eq.s32.totalorder %s31, 1
      %p89 = por %p87, %p88
      %p90 = scmp.ne.s32.totalorder %s79, %s80
      %p91 = scmp.eq.s32.totalorder %s31, 0
      %p92 = por %p90, %p91
      %p93 = scmp.ne.s32.totalorder %s79, %s80
      %p94 = scmp.eq.s32.totalorder %s32, 1
      %p95 = por %p93, %p94
      %p97 = scmp.ne.s32.totalorder %s80, %s96
      %p98 = scmp.eq.s32.totalorder %s32, 0
      %p99 = por %p97, %p98
      %s100 = ssub.s32 1, %s34
      %s101 = ssub.s32 1, %s41
      %s102 = ssub.s32 %s100, %s101
      %s103 = ssub.s32 %s33, %s45
      %s104 = sor.u32 %s102, %s103
      %p105 = scmp.eq.s32.totalorder %s104, 0
      %s107 = sadd.s32 %s106, 1
      %s108 = scalar_select %p105, %s106, %s107
      %p111 = pneg %p105
      %p112 = scmp.eq.s32.totalorder %s26, 1
      %p113 = por %p111, %p112
      %p114 = scmp.ne.s32.totalorder %s106, %s109
      %p115 = scmp.eq.s32.totalorder %s26, 0
      %p116 = por %p114, %p115
      %p117 = scmp.ne.s32.totalorder %s106, %s109
      %p118 = scmp.eq.s32.totalorder %s31, 1
      %p119 = por %p117, %p118
      %p120 = scmp.ne.s32.totalorder %s109, %s110
      %p121 = scmp.eq.s32.totalorder %s31, 0
      %p122 = por %p120, %p121
      %p123 = scmp.ne.s32.totalorder %s109, %s110
      %p124 = scmp.eq.s32.totalorder %s32, 1
      %p125 = por %p123, %p124
      %p127 = scmp.ne.s32.totalorder %s110, %s126
      %p128 = scmp.eq.s32.totalorder %s32, 0
      %p129 = por %p127, %p128
      %s131 = sadd.s32 %s130, 1
      %p134 = scmp.eq.s32.totalorder %s26, 1
      %p135 = scmp.ne.s32.totalorder %s130, %s132
      %p136 = scmp.eq.s32.totalorder %s26, 0
      %p137 = por %p135, %p136
      %p138 = scmp.ne.s32.totalorder %s130, %s132
      %p139 = scmp.eq.s32.totalorder %s31, 1
      %p140 = por %p138, %p139
      %p141 = scmp.ne.s32.totalorder %s132, %s133
      %p142 = scmp.eq.s32.totalorder %s31, 0
      %p143 = por %p141, %p142
      %p144 = scmp.ne.s32.totalorder %s132, %s133
      %p145 = scmp.eq.s32.totalorder %s32, 1
      %p146 = por %p144, %p145
      %p148 = scmp.ne.s32.totalorder %s133, %s147
      %p149 = scmp.eq.s32.totalorder %s32, 0
      %p150 = por %p148, %p149
      %s152 = sadd.s32 %s151, 1
      %p155 = scmp.eq.s32.totalorder %s26, 1
      %p156 = scmp.ne.s32.totalorder %s151, %s153
      %p157 = scmp.eq.s32.totalorder %s26, 0
      %p158 = por %p156, %p157
      %p159 = scmp.ne.s32.totalorder %s151, %s153
      %p160 = scmp.eq.s32.totalorder %s31, 1
      %p161 = por %p159, %p160
      %p162 = scmp.ne.s32.totalorder %s153, %s154
      %p163 = scmp.eq.s32.totalorder %s31, 0
      %p164 = por %p162, %p163
      %p165 = scmp.ne.s32.totalorder %s153, %s154
      %p166 = scmp.eq.s32.totalorder %s32, 1
      %p167 = por %p165, %p166
      %p169 = scmp.ne.s32.totalorder %s154, %s168
      %p170 = scmp.eq.s32.totalorder %s32, 0
      %p171 = por %p169, %p170
      %s172 = ssub.s32 %s34, %s41
      %s173 = ssub.s32 %s33, %s45
      %s174 = sor.u32 %s172, %s173
      %p175 = scmp.eq.s32.totalorder %s174, 0
      %s177 = sadd.s32 %s176, 1
      %s178 = scalar_select %p175, %s176, %s177
      %p181 = pneg %p175
      %p182 = scmp.eq.s32.totalorder %s26, 1
      %p183 = por %p181, %p182
      %p184 = scmp.ne.s32.totalorder %s176, %s179
      %p185 = scmp.eq.s32.totalorder %s26, 0
      %p186 = por %p184, %p185
      %p187 = scmp.ne.s32.totalorder %s176, %s179
      %p188 = scmp.eq.s32.totalorder %s31, 1
      %p189 = por %p187, %p188
      %p190 = scmp.ne.s32.totalorder %s179, %s180
      %p191 = scmp.eq.s32.totalorder %s31, 0
      %p192 = por %p190, %p191
      %p193 = scmp.ne.s32.totalorder %s179, %s180
      %p194 = scmp.eq.s32.totalorder %s32, 1
      %p195 = por %p193, %p194
      %p197 = scmp.ne.s32.totalorder %s180, %s196
      %p198 = scmp.eq.s32.totalorder %s32, 0
      %p199 = por %p197, %p198
      %s200 = ssub.s32 1, %s34
      %s201 = ssub.s32 1, %s41
      %s202 = ssub.s32 %s200, %s201
      %s203 = ssub.s32 %s33, %s45
      %s204 = sor.u32 %s202, %s203
      %p205 = scmp.eq.s32.totalorder %s204, 0
      %s207 = sadd.s32 %s206, 1
      %s208 = scalar_select %p205, %s206, %s207
      %p211 = pneg %p205
      %p212 = scmp.eq.s32.totalorder %s26, 1
      %p213 = por %p211, %p212
      %p214 = scmp.ne.s32.totalorder %s206, %s209
      %p215 = scmp.eq.s32.totalorder %s26, 0
      %p216 = por %p214, %p215
      %p217 = scmp.ne.s32.totalorder %s206, %s209
      %p218 = scmp.eq.s32.totalorder %s31, 1
      %p219 = por %p217, %p218
      %p220 = scmp.ne.s32.totalorder %s209, %s210
      %p221 = scmp.eq.s32.totalorder %s31, 0
      %p222 = por %p220, %p221
      %p223 = scmp.ne.s32.totalorder %s209, %s210
      %p224 = scmp.eq.s32.totalorder %s32, 1
      %p225 = por %p223, %p224
      %p227 = scmp.ne.s32.totalorder %s210, %s226
      %p228 = scmp.eq.s32.totalorder %s32, 0
      %p229 = por %p227, %p228
      %p230 = scmp.le.s32.totalorder 1, %s26
      %p231 = scmp.lt.s32.totalorder %s26, 3
      %p232 = pnand %p230, %p231
      %p233 = pneg %p232
      // Predicated region
      $region9: #{tpu_custom_call.1} parent=5 // pred_check
        _
      $region10: #{tpu_custom_call.1} parent=5 // pred_check_branch
        %235 = sbr.rel (%p232) target = $region12
      $region11: #{tpu_custom_call.1} parent=5 // pred_region
        %s236 = ssub.s32 %s26, 1
        // Predicated region
        $region13: #{tpu_custom_call.1} parent=11 // pred_check
          %p237 = pneg %p64
        $region14: #{tpu_custom_call.1} parent=11 // pred_check_branch
          %239 = sbr.rel (%p237) target = $region16
        $region15: #{tpu_custom_call.1} parent=11 // pred_region
          %s240 = smul.u32 2, %s35
          %p241 = scmp.lt.s32.totalorder %s240, 1
          %s242 = scalar_select %p241, %s240, 1
          %s243 = smul.addr %s242, 8
          %s244 = scalar_lea.vmem %s0, %s243
          %s245 = smul.u32 2, %s35
        $region16: #{tpu_custom_call.1} parent=11 // pred_fallthru
          _
        // Predicated region
        $region17: #{tpu_custom_call.1} parent=11 // pred_check
          %p246 = pneg %p143
        $region18: #{tpu_custom_call.1} parent=11 // pred_check_branch
          %248 = sbr.rel (%p246) target = $region20
        $region19: #{tpu_custom_call.1} parent=11 // pred_region
          %250 = vsyncadd [#allocation10], 0
          %s251 = sshll.u32 %s3, 4
          %s252 = int_to_ptr.hbm [resolvable:$true] %s251
          %s253 = sshll.u32 [#allocation11], 4
          %s254 = int_to_ptr.vmem [resolvable:$true] %s253
          %259 = dma.hbm_to_vmem [thread:$0]  %s252, 512, %s254, [#allocation10], 128, 128, 8
        $region20: #{tpu_custom_call.1} parent=11 // pred_fallthru
          _
        // Predicated region
        $region21: #{tpu_custom_call.1} parent=11 // pred_check
          %p260 = pneg %p164
        $region22: #{tpu_custom_call.1} parent=11 // pred_check_branch
          %262 = sbr.rel (%p260) target = $region24
        $region23: #{tpu_custom_call.1} parent=11 // pred_region
          %264 = vsyncadd [#allocation13], 0
          %s265 = sshll.u32 %s4, 4
          %s266 = int_to_ptr.hbm [resolvable:$true] %s265
          %s267 = sshll.u32 [#allocation12], 4
          %s268 = int_to_ptr.vmem [resolvable:$true] %s267
          %273 = dma.hbm_to_vmem [thread:$0]  %s266, 512, %s268, [#allocation13], 128, 128, 8
        $region24: #{tpu_custom_call.1} parent=11 // pred_fallthru
          _
      $region12: #{tpu_custom_call.1} parent=5 // pred_fallthru
        _
      %p274 = scmp.lt.s32.totalorder %s26, 2
      // Predicated region
      $region25: #{tpu_custom_call.1} parent=5 // pred_check
        %p275 = pneg %p274
      $region26: #{tpu_custom_call.1} parent=5 // pred_check_branch
        %277 = sbr.rel (%p275) target = $region28
      $region27: #{tpu_custom_call.1} parent=5 // pred_region
        // Predicated region
        $region29: #{tpu_custom_call.1} parent=27 // pred_check
          %p278 = pneg %p86
        $region30: #{tpu_custom_call.1} parent=27 // pred_check_branch
          %280 = sbr.rel (%p278) target = $region32
        $region31: #{tpu_custom_call.1} parent=27 // pred_region
          %s281 = sand.u32 %s76, 1
          %s282 = scalar_lea.sflag [#allocation7], %s281
          %s283 = sand.u32 %s76, 1
          %s284 = smul.addr %s283, 128
          %s285 = scalar_lea.vmem [#allocation6], %s284
          %s286 = smul.u32 8, %s34
          %s287 = smul.u32 2, %s33
          %289 = vsyncadd %s282, 0
          %s290 = smul.addr %s286, 2
          %s291 = sadd.s32 %s287, %s290
          %s292 = smul.addr %s291, 8
          %s293 = scalar_lea.hbm %s1, %s292
          %s294 = sshll.u32 %s293, 4
          %s295 = int_to_ptr.hbm [resolvable:$true] %s294
          %s296 = sshll.u32 %s285, 4
          %s297 = int_to_ptr.vmem [resolvable:$true] %s296
          %302 = dma.hbm_to_vmem [thread:$0]  %s295, 2048, %s297, %s282, 128, 128, 8
        $region32: #{tpu_custom_call.1} parent=27 // pred_fallthru
          _
        // Predicated region
        $region33: #{tpu_custom_call.1} parent=27 // pred_check
          %p303 = pneg %p116
        $region34: #{tpu_custom_call.1} parent=27 // pred_check_branch
          %305 = sbr.rel (%p303) target = $region36
        $region35: #{tpu_custom_call.1} parent=27 // pred_region
          %s306 = sand.u32 %s26, 1
          %s307 = scalar_lea.sflag [#allocation10], %s306
          %s308 = sand.u32 %s106, 1
          %s309 = smul.addr %s308, 128
          %s310 = scalar_lea.vmem [#allocation9], %s309
          %s311 = ssub.s32 1, %s34
          %s312 = smul.u32 8, %s311
          %s313 = smul.u32 2, %s33
          %315 = vsyncadd %s307, 0
          %s316 = smul.addr %s312, 2
          %s317 = sadd.s32 %s313, %s316
          %s318 = smul.addr %s317, 8
          %s319 = scalar_lea.hbm %s2, %s318
          %s320 = sshll.u32 %s319, 4
          %s321 = int_to_ptr.hbm [resolvable:$true] %s320
          %s322 = sshll.u32 %s310, 4
          %s323 = int_to_ptr.vmem [resolvable:$true] %s322
          %328 = dma.hbm_to_vmem [thread:$0]  %s321, 2048, %s323, %s307, 128, 128, 8
        $region36: #{tpu_custom_call.1} parent=27 // pred_fallthru
          _
      $region28: #{tpu_custom_call.1} parent=5 // pred_fallthru
        _
      %p329 = scmp.le.s32.totalorder 1, %s26
      %p330 = scmp.lt.s32.totalorder %s26, 3
      %p331 = pnand %p329, %p330
      %p332 = pneg %p331
      // Predicated region
      $region37: #{tpu_custom_call.1} parent=5 // pred_check
        _
      $region38: #{tpu_custom_call.1} parent=5 // pred_check_branch
        %334 = sbr.rel (%p331) target = $region40
      $region39: #{tpu_custom_call.1} parent=5 // pred_region
        %s335 = ssub.s32 %s26, 1
        %s336 = sand.u32 %s79, 1
        %s337 = scalar_lea.sflag [#allocation7], %s336
        %s338 = sand.u32 %s79, 1
        %s339 = smul.addr %s338, 128
        %s340 = scalar_lea.vmem [#allocation6], %s339
        // Predicated region
        $region41: #{tpu_custom_call.1} parent=39 // pred_check
          %p341 = pneg %p92
        $region42: #{tpu_custom_call.1} parent=39 // pred_check_branch
          %343 = sbr.rel (%p341) target = $region44
        $region43: #{tpu_custom_call.1} parent=39 // pred_region
          %345 = dma.done %s337, 2048
        $region44: #{tpu_custom_call.1} parent=39 // pred_fallthru
          _
        %s346 = sand.u32 %s31, 1
        %s347 = scalar_lea.sflag [#allocation10], %s346
        %s348 = sand.u32 %s109, 1
        %s349 = smul.addr %s348, 128
        %s350 = scalar_lea.vmem [#allocation9], %s349
        // Predicated region
        $region45: #{tpu_custom_call.1} parent=39 // pred_check
          %p351 = pneg %p122
        $region46: #{tpu_custom_call.1} parent=39 // pred_check_branch
          %353 = sbr.rel (%p351) target = $region48
        $region47: #{tpu_custom_call.1} parent=39 // pred_region
          %355 = dma.done %s347, 2048
        $region48: #{tpu_custom_call.1} parent=39 // pred_fallthru
          _
        // Predicated region
        $region49: #{tpu_custom_call.1} parent=39 // pred_check
          %p356 = pneg %p143
        $region50: #{tpu_custom_call.1} parent=39 // pred_check_branch
          %358 = sbr.rel (%p356) target = $region52
        $region51: #{tpu_custom_call.1} parent=39 // pred_region
          %360 = dma.done [#allocation10], 512
        $region52: #{tpu_custom_call.1} parent=39 // pred_fallthru
          _
        // Predicated region
        $region53: #{tpu_custom_call.1} parent=39 // pred_check
          %p361 = pneg %p164
        $region54: #{tpu_custom_call.1} parent=39 // pred_check_branch
          %363 = sbr.rel (%p361) target = $region56
        $region55: #{tpu_custom_call.1} parent=39 // pred_region
          %365 = dma.done [#allocation13], 512
        $region56: #{tpu_custom_call.1} parent=39 // pred_fallthru
          _
        %s366 = smul.u32 2, %s35
        %p367 = scmp.lt.s32.totalorder %s366, 1
        %s368 = scalar_select %p367, %s366, 1
        %s369 = smul.addr %s368, 8
        %s370 = scalar_lea.vmem %s0, %s369
        %p371 = pneg %p64
        %p372 = pneg %p61
        %s373 = sand.u32 %s79, 1
        %s374 = scalar_lea.sflag [#allocation7], %s373
        %s375 = sand.u32 %s79, 1
        %s376 = smul.addr %s375, 128
        %s377 = scalar_lea.vmem [#allocation6], %s376
        %p378 = pneg %p92
        %p379 = pneg %p89
        %s380 = sand.u32 %s31, 1
        %s381 = scalar_lea.sflag [#allocation10], %s380
        %s382 = sand.u32 %s109, 1
        %s383 = smul.addr %s382, 128
        %s384 = scalar_lea.vmem [#allocation9], %s383
        %p385 = pneg %p122
        %p386 = pneg %p119
        %p387 = pneg %p143
        %p388 = pneg %p140
        %p389 = pneg %p164
        %p390 = pneg %p161
        %p391 = pneg %p192
        %p392 = pneg %p189
        %s393 = sand.u32 %s179, 1
        %s394 = scalar_lea.sflag [#allocation8], %s393
        %s395 = sand.u32 %s179, 1
        %s396 = smul.addr %s395, 128
        %s397 = scalar_lea.vmem [#allocation14], %s396
        %p398 = pneg %p222
        %p399 = pneg %p219
        %s400 = sand.u32 %s209, 1
        %s401 = scalar_lea.sflag [#allocation16], %s400
        %s402 = sand.u32 %s209, 1
        %s403 = smul.addr %s402, 128
        %s404 = scalar_lea.vmem [#allocation15], %s403
        %s405 = smul.u32 2, %s35
        %p406 = scmp.lt.s32.totalorder %s405, 1
        %s407 = scalar_select %p406, %s405, 1
        %s408 = smul.addr %s407, 8
        %s409 = scalar_lea.vmem %s0, %s408
        %s410 = smul.u32 2, %s35
        %s411 = smul.u32 8, %s36
        %s412 = smul.u32 2, %s35
        %s413 = ssub.s32 1, %s36
        %s414 = smul.u32 8, %s413
        %s415 = smul.u32 2, %s35
        %s416 = smul.u32 8, %s36
        %s417 = smul.u32 2, %s35
        %s418 = ssub.s32 1, %s36
        %s419 = smul.u32 8, %s418
        %s420 = smul.u32 2, %s35
        %p421 = scmp.eq.s32.totalorder %s36, 0
        // Predicated region
        $region57: #{tpu_custom_call.1} parent=39 // pred_check
          %p422 = pneg %p421
        $region58: #{tpu_custom_call.1} parent=39 // pred_check_branch
          %424 = sbr.rel (%p422) target = $region60
        $region59: #{tpu_custom_call.1} parent=39 // pred_region
          %vm425 = vcmask 261120
          %426 = vst.msk [vmem:[#allocation2] sm:$0xff] %vm425, 0.0
          %427 = vst.msk [vmem:[#allocation2 + $0x8] sm:$0xff] %vm425, 0.0
          %428 = vst.msk [vmem:[#allocation3] sm:$0xff] %vm425, 0.0
          %429 = vst.msk [vmem:[#allocation3 + $0x8] sm:$0xff] %vm425, 0.0
          %430 = vst.msk [vmem:[#allocation4] sm:$0xff] %vm425, 0.0
          %431 = vst.msk [vmem:[#allocation4 + $0x8] sm:$0xff] %vm425, 0.0
          %432 = vst.msk [vmem:[#allocation5] sm:$0xff] %vm425, 0.0
          %433 = vst.msk [vmem:[#allocation5 + $0x8] sm:$0xff] %vm425, 0.0
        $region60: #{tpu_custom_call.1} parent=39 // pred_fallthru
          _
        %v434 = vld [vmem:[%s409] sm:$0xff]
        %v435 = vld [vmem:[%s409 + $0x8] sm:$0xff]
        %v436 = vld [vmem:[#allocation11] sm:$0xff]
        %v437 = vld [vmem:[#allocation11 + $0x8] sm:$0xff]
        %v438 = vld [vmem:[#allocation11 + $0x10] sm:$0xff]
        %v439 = vld [vmem:[#allocation11 + $0x18] sm:$0xff]
        %v440 = vld [vmem:[#allocation12] sm:$0xff]
        %v441 = vld [vmem:[#allocation12 + $0x8] sm:$0xff]
        %v442 = vld [vmem:[#allocation12 + $0x10] sm:$0xff]
        %v443 = vld [vmem:[#allocation12 + $0x18] sm:$0xff]
        %s444 = smul.u32 %s36, 8
        %s445 = ssub.s32 1, %s36
        %s446 = smul.u32 %s445, 8
        %v447 = vld [vmem:[#allocation2] sm:$0xff]
        %v448 = vld [vmem:[#allocation2 + $0x8] sm:$0xff]
        %v449 = vld [vmem:[#allocation3] sm:$0xff]
        %v450 = vld [vmem:[#allocation3 + $0x8] sm:$0xff]
        %v451 = vld [vmem:[#allocation4] sm:$0xff]
        %v452 = vld [vmem:[#allocation4 + $0x8] sm:$0xff]
        %v453 = vld [vmem:[#allocation5] sm:$0xff]
        %v454 = vld [vmem:[#allocation5 + $0x8] sm:$0xff]
        loop: start=0, step=1, limit=8
        $region61: #{tpu_custom_call.1} parent=39 // loop_pre_header
          _
        $region62: #{tpu_custom_call.1} parent=39 // loop_header
          %s456 = sphi 0, %s460
          %p457 = scmp.ge.s32.totalorder %s456, 8
          %v461 = vphi %v447, %v782
          %v462 = vphi %v448, %v784
          %v463 = vphi %v449, %v790
          %v464 = vphi %v450, %v792
          %v465 = vphi %v451, %v798
          %v466 = vphi %v452, %v800
          %v467 = vphi %v453, %v806
          %v468 = vphi %v454, %v808
        $region63: #{tpu_custom_call.1} parent=39 // loop_header_branch
          %459 = sbr.rel (%p457) target = $region67
        $region64: #{tpu_custom_call.1} parent=39 // loop_body
          %s469 = smul.u32 %s456, 16
          %s470 = scalar_lea.vmem %s340, %s469 [#allocation6]
          %v471 = vld [vmem:[%s470] sm:$0xff]
          %v472 = vld [vmem:[%s470 + $0x8] sm:$0xff]
          %vm473 = vcmask 261120
          %v475 = vsel %vm473, %v461, 0
          %v478 = vsel %vm473, %v462, 0
          %480 = vmatpush.msra.mxu0 0.0
          %481 = vmatpush.msra.mxu0 0.0
          %482 = vmatpush.msra.mxu0 0.0
          %483 = vmatpush.msra.mxu0 0.0
          %484 = vmatpush.msra.mxu0 0.0
          %485 = vmatpush.msra.mxu0 0.0
          %486 = vmatpush.msra.mxu0 0.0
          %487 = vmatpush.msra.mxu0 0.0
          %488 = vmatpush.msra.mxu0 0.0
          %489 = vmatpush.msra.mxu0 0.0
          %490 = vmatpush.msra.mxu0 0.0
          %491 = vmatpush.msra.mxu0 0.0
          %492 = vmatpush.msra.mxu0 %v439
          %493 = vmatpush.msra.mxu0 %v438
          %494 = vmatpush.msra.mxu0 %v437
          %495 = vmatpush.msra.mxu0 %v436
          %496 = vmatmul.f32.gmra.mxu0 %v475
          %v497 = vpop.f32.mrf.mxu0
          %v498 = vadd.f32 0.0, %v497
          %499 = vmatmul.f32.gmra.mxu0 %v478
          %v500 = vpop.f32.mrf.mxu0
          %v501 = vadd.f32 0.0, %v500
          %502 = vdwg.mxu0
          %v503 = vadd.f32 %v471, %v498
          %v504 = vadd.f32 %v472, %v501
          %v505 = vxor.u32 %v503, 2147483648
          %v506 = vxor.u32 %v504, 2147483648
          %v507 = vmul.f32 %v505, 1.442695
          %v508 = vpow.pop %v507
          %v509 = vmul.f32 %v506, 1.442695
          %v510 = vpow.pop %v509
          %v511 = vadd.f32 %v508, 1.0
          %v512 = vadd.f32 %v510, 1.0
          %v513 = vrcp.pop %v511
          %v514 = vmul.f32 %v511, %v513
          %v515 = vsub.f32 1.0, %v514
          %v516 = vmul.f32 %v513, %v515
          %v517 = vadd.f32 %v513, %v516
          %vm518 = vweird.f32 %v511
          %vm519 = vweird.f32 %v513
          %vm520 = vmor %vm518, %vm519
          %v521 = vsel %vm520, %v513, %v517
          %v522 = vand.u32 2147483647, %v511
          %vm523 = vcmp.eq.f32.partialorder %v522, 8.507059e+37
          %v524 = vand.u32 %v511, 2147483648
          %v525 = vor.u32 1.1754944e-38, %v524
          %v526 = vsel %vm523, %v525, %v521
          %v527 = vmul.f32 1.0, %v526
          %v528 = vrcp.pop %v512
          %v529 = vmul.f32 %v512, %v528
          %v530 = vsub.f32 1.0, %v529
          %v531 = vmul.f32 %v528, %v530
          %v532 = vadd.f32 %v528, %v531
          %vm533 = vweird.f32 %v512
          %vm534 = vweird.f32 %v528
          %vm535 = vmor %vm533, %vm534
          %v536 = vsel %vm535, %v528, %v532
          %v537 = vand.u32 2147483647, %v512
          %vm538 = vcmp.eq.f32.partialorder %v537, 8.507059e+37
          %v539 = vand.u32 %v512, 2147483648
          %v540 = vor.u32 1.1754944e-38, %v539
          %v541 = vsel %vm538, %v540, %v536
          %v542 = vmul.f32 1.0, %v541
          %v543 = vtanh.pop %v503
          %v544 = vtanh.pop %v504
          %547 = vrot.lane.b32.xlu0 %v463, 32
          %v548 = vpop.permute.xlu0 %547
          %549 = vrot.lane.b32.xlu0 %v464, 32
          %v550 = vpop.permute.xlu0 %549
          %v553 = vmul.f32 %v527, %v548
          %v554 = vmul.f32 %v542, %v550
          %557 = vrot.lane.b32.xlu0 %v543, 64
          %v558 = vpop.permute.xlu0 %557
          %559 = vrot.lane.b32.xlu0 %v544, 64
          %v560 = vpop.permute.xlu0 %559
          %v563 = vmul.f32 %v527, %v558
          %v564 = vmul.f32 %v542, %v560
          %567 = vrot.lane.b32.xlu0 %v563, 32
          %v568 = vpop.permute.xlu0 %567
          %569 = vrot.lane.b32.xlu0 %v564, 32
          %v570 = vpop.permute.xlu0 %569
          %v573 = vadd.f32 %v553, %v568
          %v574 = vadd.f32 %v554, %v570
          %v575 = vtanh.pop %v573
          %v576 = vtanh.pop %v574
          %579 = vrot.lane.b32.xlu0 %v575, 64
          %v580 = vpop.permute.xlu0 %579
          %581 = vrot.lane.b32.xlu0 %v576, 64
          %v582 = vpop.permute.xlu0 %581
          %v585 = vmul.f32 %v527, %v580
          %v586 = vmul.f32 %v542, %v582
          %s587 = sadd.s32 %s444, %s456
          %v588 = vstv %s587
          %vm589 = vcmp.lt.s32.totalorder %v588, %v434
          %vm590 = vcmp.lt.s32.totalorder %v588, %v435
          %v591 = vsel %vm589, 1, 0
          %v592 = vsel %vm590, 1, 0
          %593 = vset.pattern.permute.xlu0 0
          %594 = vperm.xlu0 %593, %v591
          %v595 = vpop.permute.xlu0 %594
          %596 = vset.pattern.permute.xlu0 0
          %597 = vperm.xlu0 %596, %v592
          %v598 = vpop.permute.xlu0 %597
          %vm599 = vcmp.eq.s32.totalorder %v595, 1
          %vm600 = vcmp.eq.s32.totalorder %v598, 1
          %601 = vrot.lane.b32.xlu0 %v461, 96
          %v602 = vpop.permute.xlu0 %601
          %603 = vrot.lane.b32.xlu0 %v462, 96
          %v604 = vpop.permute.xlu0 %603
          %v607 = vsel %vm599, %v585, %v602
          %v608 = vsel %vm600, %v586, %v604
          %v609 = vsel %vm599, %v573, %v548
          %v610 = vsel %vm600, %v574, %v550
          %v611 = vsel %vm599, %v585, 0.0
          %v612 = vsel %vm600, %v586, 0.0
          %615 = vrot.lane.b32.xlu0 %v611, 32
          %v616 = vpop.permute.xlu0 %615
          %617 = vrot.lane.b32.xlu0 %v612, 32
          %v618 = vpop.permute.xlu0 %617
          %s621 = scalar_lea.vmem %s397, %s469 [#allocation14]
          %622 = vst.msk [vmem:[%s621] sm:$0xff] %vm473, %v616
          %623 = vst.msk [vmem:[%s621 + $0x8] sm:$0xff] %vm473, %v618
          %s624 = ssub.s32 7, %s456
          %s625 = smul.u32 %s624, 16
          %s626 = scalar_lea.vmem %s350, %s625 [#allocation9]
          %v627 = vld [vmem:[%s626] sm:$0xff]
          %v628 = vld [vmem:[%s626 + $0x8] sm:$0xff]
          %v630 = vsel %vm473, %v465, 0
          %v633 = vsel %vm473, %v466, 0
          %635 = vmatpush.msra.mxu0 0.0
          %636 = vmatpush.msra.mxu0 0.0
          %637 = vmatpush.msra.mxu0 0.0
          %638 = vmatpush.msra.mxu0 0.0
          %639 = vmatpush.msra.mxu0 0.0
          %640 = vmatpush.msra.mxu0 0.0
          %641 = vmatpush.msra.mxu0 0.0
          %642 = vmatpush.msra.mxu0 0.0
          %643 = vmatpush.msra.mxu0 0.0
          %644 = vmatpush.msra.mxu0 0.0
          %645 = vmatpush.msra.mxu0 0.0
          %646 = vmatpush.msra.mxu0 0.0
          %647 = vmatpush.msra.mxu0 %v443
          %648 = vmatpush.msra.mxu0 %v442
          %649 = vmatpush.msra.mxu0 %v441
          %650 = vmatpush.msra.mxu0 %v440
          %651 = vmatmul.f32.gmra.mxu0 %v630
          %v652 = vpop.f32.mrf.mxu0
          %v653 = vadd.f32 0.0, %v652
          %654 = vmatmul.f32.gmra.mxu0 %v633
          %v655 = vpop.f32.mrf.mxu0
          %v656 = vadd.f32 0.0, %v655
          %657 = vdwg.mxu0
          %v658 = vadd.f32 %v627, %v653
          %v659 = vadd.f32 %v628, %v656
          %v660 = vxor.u32 %v658, 2147483648
          %v661 = vxor.u32 %v659, 2147483648
          %v662 = vmul.f32 %v660, 1.442695
          %v663 = vpow.pop %v662
          %v664 = vmul.f32 %v661, 1.442695
          %v665 = vpow.pop %v664
          %v666 = vadd.f32 %v663, 1.0
          %v667 = vadd.f32 %v665, 1.0
          %v668 = vrcp.pop %v666
          %v669 = vmul.f32 %v666, %v668
          %v670 = vsub.f32 1.0, %v669
          %v671 = vmul.f32 %v668, %v670
          %v672 = vadd.f32 %v668, %v671
          %vm673 = vweird.f32 %v666
          %vm674 = vweird.f32 %v668
          %vm675 = vmor %vm673, %vm674
          %v676 = vsel %vm675, %v668, %v672
          %v677 = vand.u32 2147483647, %v666
          %vm678 = vcmp.eq.f32.partialorder %v677, 8.507059e+37
          %v679 = vand.u32 %v666, 2147483648
          %v680 = vor.u32 1.1754944e-38, %v679
          %v681 = vsel %vm678, %v680, %v676
          %v682 = vmul.f32 1.0, %v681
          %v683 = vrcp.pop %v667
          %v684 = vmul.f32 %v667, %v683
          %v685 = vsub.f32 1.0, %v684
          %v686 = vmul.f32 %v683, %v685
          %v687 = vadd.f32 %v683, %v686
          %vm688 = vweird.f32 %v667
          %vm689 = vweird.f32 %v683
          %vm690 = vmor %vm688, %vm689
          %v691 = vsel %vm690, %v683, %v687
          %v692 = vand.u32 2147483647, %v667
          %vm693 = vcmp.eq.f32.partialorder %v692, 8.507059e+37
          %v694 = vand.u32 %v667, 2147483648
          %v695 = vor.u32 1.1754944e-38, %v694
          %v696 = vsel %vm693, %v695, %v691
          %v697 = vmul.f32 1.0, %v696
          %v698 = vtanh.pop %v658
          %v699 = vtanh.pop %v659
          %702 = vrot.lane.b32.xlu0 %v467, 32
          %v703 = vpop.permute.xlu0 %702
          %704 = vrot.lane.b32.xlu0 %v468, 32
          %v705 = vpop.permute.xlu0 %704
          %v708 = vmul.f32 %v682, %v703
          %v709 = vmul.f32 %v697, %v705
          %712 = vrot.lane.b32.xlu0 %v698, 64
          %v713 = vpop.permute.xlu0 %712
          %714 = vrot.lane.b32.xlu0 %v699, 64
          %v715 = vpop.permute.xlu0 %714
          %v718 = vmul.f32 %v682, %v713
          %v719 = vmul.f32 %v697, %v715
          %722 = vrot.lane.b32.xlu0 %v718, 32
          %v723 = vpop.permute.xlu0 %722
          %724 = vrot.lane.b32.xlu0 %v719, 32
          %v725 = vpop.permute.xlu0 %724
          %v728 = vadd.f32 %v708, %v723
          %v729 = vadd.f32 %v709, %v725
          %v730 = vtanh.pop %v728
          %v731 = vtanh.pop %v729
          %734 = vrot.lane.b32.xlu0 %v730, 64
          %v735 = vpop.permute.xlu0 %734
          %736 = vrot.lane.b32.xlu0 %v731, 64
          %v737 = vpop.permute.xlu0 %736
          %v740 = vmul.f32 %v682, %v735
          %v741 = vmul.f32 %v697, %v737
          %s742 = sadd.s32 %s446, %s624
          %v743 = vstv %s742
          %vm744 = vcmp.lt.s32.totalorder %v743, %v434
          %vm745 = vcmp.lt.s32.totalorder %v743, %v435
          %v746 = vsel %vm744, 1, 0
          %v747 = vsel %vm745, 1, 0
          %748 = vset.pattern.permute.xlu0 0
          %749 = vperm.xlu0 %748, %v746
          %v750 = vpop.permute.xlu0 %749
          %751 = vset.pattern.permute.xlu0 0
          %752 = vperm.xlu0 %751, %v747
          %v753 = vpop.permute.xlu0 %752
          %vm754 = vcmp.eq.s32.totalorder %v750, 1
          %vm755 = vcmp.eq.s32.totalorder %v753, 1
          %756 = vrot.lane.b32.xlu0 %v465, 96
          %v757 = vpop.permute.xlu0 %756
          %758 = vrot.lane.b32.xlu0 %v466, 96
          %v759 = vpop.permute.xlu0 %758
          %v762 = vsel %vm754, %v740, %v757
          %v763 = vsel %vm755, %v741, %v759
          %v764 = vsel %vm754, %v728, %v703
          %v765 = vsel %vm755, %v729, %v705
          %v766 = vsel %vm754, %v740, 0.0
          %v767 = vsel %vm755, %v741, 0.0
          %770 = vrot.lane.b32.xlu0 %v766, 32
          %v771 = vpop.permute.xlu0 %770
          %772 = vrot.lane.b32.xlu0 %v767, 32
          %v773 = vpop.permute.xlu0 %772
          %s776 = scalar_lea.vmem %s404, %s625 [#allocation15]
          %777 = vst.msk [vmem:[%s776] sm:$0xff] %vm473, %v771
          %778 = vst.msk [vmem:[%s776 + $0x8] sm:$0xff] %vm473, %v773
          %781 = vrot.lane.b32.xlu0 %v607, 32
          %v782 = vpop.permute.xlu0 %781
          %783 = vrot.lane.b32.xlu0 %v608, 32
          %v784 = vpop.permute.xlu0 %783
          %789 = vrot.lane.b32.xlu0 %v609, 96
          %v790 = vpop.permute.xlu0 %789
          %791 = vrot.lane.b32.xlu0 %v610, 96
          %v792 = vpop.permute.xlu0 %791
          %797 = vrot.lane.b32.xlu0 %v762, 32
          %v798 = vpop.permute.xlu0 %797
          %799 = vrot.lane.b32.xlu0 %v763, 32
          %v800 = vpop.permute.xlu0 %799
          %805 = vrot.lane.b32.xlu0 %v764, 96
          %v806 = vpop.permute.xlu0 %805
          %807 = vrot.lane.b32.xlu0 %v765, 96
          %v808 = vpop.permute.xlu0 %807
        $region65: #{tpu_custom_call.1} parent=39 // loop_footer
          %s460 = sadd.s32 1, %s456
        $region66: #{tpu_custom_call.1} parent=39 // loop_footer_branch
          %455 = sbr.rel target = $region62
        $region67: #{tpu_custom_call.1} parent=39 // loop_exit
          _
        %vm811 = vcmask 261120
        %812 = vst.msk [vmem:[#allocation2] sm:$0xff] %vm811, %v461
        %813 = vst.msk [vmem:[#allocation2 + $0x8] sm:$0xff] %vm811, %v462
        %814 = vst.msk [vmem:[#allocation3] sm:$0xff] %vm811, %v463
        %815 = vst.msk [vmem:[#allocation3 + $0x8] sm:$0xff] %vm811, %v464
        %816 = vst.msk [vmem:[#allocation4] sm:$0xff] %vm811, %v465
        %817 = vst.msk [vmem:[#allocation4 + $0x8] sm:$0xff] %vm811, %v466
        %818 = vst.msk [vmem:[#allocation5] sm:$0xff] %vm811, %v467
        %819 = vst.msk [vmem:[#allocation5 + $0x8] sm:$0xff] %vm811, %v468
        %s820 = sand.u32 %s179, 1
        %s821 = scalar_lea.sflag [#allocation8], %s820
        %s822 = sand.u32 %s179, 1
        %s823 = smul.addr %s822, 128
        %s824 = scalar_lea.vmem [#allocation14], %s823
        %s825 = sand.u32 %s209, 1
        %s826 = scalar_lea.sflag [#allocation16], %s825
        %s827 = sand.u32 %s209, 1
        %s828 = smul.addr %s827, 128
        %s829 = scalar_lea.vmem [#allocation15], %s828
        // Predicated region
        $region68: #{tpu_custom_call.1} parent=39 // pred_check
          %p830 = pneg %p189
        $region69: #{tpu_custom_call.1} parent=39 // pred_check_branch
          %832 = sbr.rel (%p830) target = $region71
        $region70: #{tpu_custom_call.1} parent=39 // pred_region
          %s833 = smul.u32 8, %s36
          %s834 = smul.u32 2, %s35
          %836 = vsyncadd %s821, 0
          %s837 = smul.addr %s833, 2
          %s838 = sadd.s32 %s834, %s837
          %s839 = smul.addr %s838, 8
          %s840 = scalar_lea.hbm %s5, %s839
          %s841 = sshll.u32 %s824, 4
          %s842 = int_to_ptr.vmem [resolvable:$true] %s841
          %s843 = sshll.u32 %s840, 4
          %s844 = int_to_ptr.hbm [resolvable:$true] %s843
          %849 = dma.vmem_to_hbm [thread:$0]  %s842, 2048, %s844, %s821, 128, 128, 8
        $region71: #{tpu_custom_call.1} parent=39 // pred_fallthru
          _
        // Predicated region
        $region72: #{tpu_custom_call.1} parent=39 // pred_check
          %p850 = pneg %p219
        $region73: #{tpu_custom_call.1} parent=39 // pred_check_branch
          %852 = sbr.rel (%p850) target = $region75
        $region74: #{tpu_custom_call.1} parent=39 // pred_region
          %s853 = ssub.s32 1, %s36
          %s854 = smul.u32 8, %s853
          %s855 = smul.u32 2, %s35
          %857 = vsyncadd %s826, 0
          %s858 = smul.addr %s854, 2
          %s859 = sadd.s32 %s855, %s858
          %s860 = smul.addr %s859, 8
          %s861 = scalar_lea.hbm %s6, %s860
          %s862 = sshll.u32 %s829, 4
          %s863 = int_to_ptr.vmem [resolvable:$true] %s862
          %s864 = sshll.u32 %s861, 4
          %s865 = int_to_ptr.hbm [resolvable:$true] %s864
          %870 = dma.vmem_to_hbm [thread:$0]  %s863, 2048, %s865, %s826, 128, 128, 8
        $region75: #{tpu_custom_call.1} parent=39 // pred_fallthru
          _
      $region40: #{tpu_custom_call.1} parent=5 // pred_fallthru
        _
      %p871 = scmp.le.s32.totalorder 2, %s26
      // Predicated region
      $region76: #{tpu_custom_call.1} parent=5 // pred_check
        %p872 = pneg %p871
      $region77: #{tpu_custom_call.1} parent=5 // pred_check_branch
        %874 = sbr.rel (%p872) target = $region79
      $region78: #{tpu_custom_call.1} parent=5 // pred_region
        %s875 = ssub.s32 %s26, 2
        // Predicated region
        $region80: #{tpu_custom_call.1} parent=78 // pred_check
          %p876 = pneg %p195
        $region81: #{tpu_custom_call.1} parent=78 // pred_check_branch
          %878 = sbr.rel (%p876) target = $region83
        $region82: #{tpu_custom_call.1} parent=78 // pred_region
          %s879 = sand.u32 %s180, 1
          %s880 = scalar_lea.sflag [#allocation8], %s879
          %s881 = sand.u32 %s180, 1
          %s882 = smul.addr %s881, 128
          %s883 = scalar_lea.vmem [#allocation14], %s882
          %885 = dma.done %s880, 2048
        $region83: #{tpu_custom_call.1} parent=78 // pred_fallthru
          _
        // Predicated region
        $region84: #{tpu_custom_call.1} parent=78 // pred_check
          %p886 = pneg %p225
        $region85: #{tpu_custom_call.1} parent=78 // pred_check_branch
          %888 = sbr.rel (%p886) target = $region87
        $region86: #{tpu_custom_call.1} parent=78 // pred_region
          %s889 = sand.u32 %s210, 1
          %s890 = scalar_lea.sflag [#allocation16], %s889
          %s891 = sand.u32 %s210, 1
          %s892 = smul.addr %s891, 128
          %s893 = scalar_lea.vmem [#allocation15], %s892
          %895 = dma.done %s890, 2048
        $region87: #{tpu_custom_call.1} parent=78 // pred_fallthru
          _
      $region79: #{tpu_custom_call.1} parent=5 // pred_fallthru
        _
    $region6: #{tpu_custom_call.1} parent=1 // loop_footer
      %s30 = sadd.s32 1, %s26
    $region7: #{tpu_custom_call.1} parent=1 // loop_footer_branch
      %25 = sbr.rel target = $region3
    $region8: #{tpu_custom_call.1} parent=1 // loop_exit
      _
    %896 = vsyncpa [#allocation7], 1
    %s897 = scalar_lea.sflag [#allocation7], 1
    %898 = vsyncpa %s897, 1
    %899 = vsyncpa [#allocation10], 1
    %s900 = scalar_lea.sflag [#allocation10], 1
    %901 = vsyncpa %s900, 1
    %902 = vsyncpa [#allocation13], 1
    %903 = vsyncpa [#allocation8], 1
    %s904 = scalar_lea.sflag [#allocation8], 1
    %905 = vsyncpa %s904, 1
    %906 = vsyncpa [#allocation16], 1
    %s907 = scalar_lea.sflag [#allocation16], 1
    %908 = vsyncpa %s907, 1

</llo_original>
